<compile_context>
chip_gen: v7x
topology: tpu7x:2x2x1
jax: 0.10.0
libtpu: 0.0.40
codegen_flags: <defaults>
</compile_context>

<pallas_src>
import math
import functools

import numpy as np
import jax
import jax.numpy as jnp
from jax.experimental import pallas as pl
from jax.experimental.pallas import tpu as pltpu

NUM_HEADS = 6  # must divide 300 / 600 / 1800


def _rup(x, m):
    return ((x + m - 1) // m) * m


def _pad_and_tile(n):
    """Pick (padded_n, tile): padded_n % tile == 0, tile is a multiple of 128 <= 1024,
    minimizing grid steps while keeping padding waste small."""
    thr = max(128, (7 * n) // 100)
    best = None  # (steps, waste, npad, tile)
    for t in (1024, 896, 768, 640, 512, 384, 256, 128):
        npad = _rup(n, t)
        waste = npad - n
        if waste > thr and t != 128:
            continue
        cand = (npad // t, waste, npad, t)
        if best is None or cand[:2] < best[:2]:
            best = cand
    return best[2], best[3]


# ----------------------------------------------------------------------------
# Pallas kernel 1: tiled linear  y = x @ Wp + b   (optionally fused ReLU)
#   Wp is pre-padded / pre-transposed bf16 [Kp, Np]; bias is f32 [1, Np].
#   Output block is revisited across the k axis (accumulator in VMEM).
# ----------------------------------------------------------------------------
def _linear_kernel(x_ref, w_ref, b_ref, o_ref, *, relu):
    k = pl.program_id(1)

    @pl.when(k == 0)
    def _():
        o_ref[...] = jnp.broadcast_to(b_ref[...], o_ref.shape)

    o_ref[...] += jnp.dot(x_ref[...], w_ref[...],
                          preferred_element_type=jnp.float32)

    if relu:
        @pl.when(k == pl.num_programs(1) - 1)
        def _():
            o_ref[...] = jnp.maximum(o_ref[...], 0.0)


@functools.partial(jax.jit, static_argnames=('n', 'kp', 'tn', 'tk', 'relu'))
def _linear_impl(x, w, b, *, n, kp, tn, tk, relu):
    M, K = x.shape
    Mp = _rup(max(M, 8), 8)
    xb = x.astype(jnp.bfloat16)
    if (Mp, kp) != (M, K):
        xb = jnp.zeros((Mp, kp), jnp.bfloat16).at[:M, :K].set(xb)
    Np = w.shape[1]
    grid = (Np // tn, kp // tk)
    out = pl.pallas_call(
        functools.partial(_linear_kernel, relu=relu),
        out_shape=jax.ShapeDtypeStruct((Mp, Np), jnp.float32),
        grid_spec=pltpu.PrefetchScalarGridSpec(
            num_scalar_prefetch=0,
            grid=grid,
            in_specs=[
                pl.BlockSpec((Mp, tk), lambda nn, kk: (0, kk)),
                pl.BlockSpec((tk, tn), lambda nn, kk: (kk, nn)),
                pl.BlockSpec((1, tn), lambda nn, kk: (0, nn)),
            ],
            out_specs=pl.BlockSpec((Mp, tn), lambda nn, kk: (0, nn)),
        ),
        compiler_params=pltpu.CompilerParams(
            dimension_semantics=("parallel", "arbitrary")),
    )(xb, w, b)
    return out[:M, :n]


def pallas_linear(x, lin, relu=False):
    """x:[M,K] f32, lin: prepped dict (bf16 weight [Kp,Np], f32 bias [1,Np])."""
    return _linear_impl(x, lin['w'], lin['b'], n=lin['N'], kp=lin['Kp'],
                        tn=lin['TN'], tk=lin['TK'], relu=relu)


def _prep_linear(w, b=None):
    """w: [N, K] torch nn.Linear layout -> padded, transposed, bf16."""
    w = np.asarray(w, np.float32)
    N, K = w.shape
    Np, TN = _pad_and_tile(N)
    Kp, TK = _pad_and_tile(K)
    wp = np.zeros((Kp, Np), np.float32)
    wp[:K, :N] = w.T
    bp = np.zeros((1, Np), np.float32)
    if b is not None:
        bp[0, :N] = np.asarray(b, np.float32)
    return {'w': jnp.asarray(wp, jnp.bfloat16), 'b': jnp.asarray(bp, jnp.float32),
            'N': N, 'K': K, 'Np': Np, 'Kp': Kp, 'TN': TN, 'TK': TK}


# ----------------------------------------------------------------------------
# Pallas kernel 2: LayerNorm over the last dim (single whole-array block, f32)
# ----------------------------------------------------------------------------
def _layernorm_kernel(x_ref, g_ref, b_ref, o_ref):
    x = x_ref[...]
    mu = jnp.mean(x, axis=-1, keepdims=True)
    xc = x - mu
    var = jnp.mean(xc * xc, axis=-1, keepdims=True)
    o_ref[...] = xc * jax.lax.rsqrt(var + 1e-5) * g_ref[...] + b_ref[...]


@jax.jit
def pallas_layernorm(x, g, b):
    M, D = x.shape
    return pl.pallas_call(
        _layernorm_kernel,
        out_shape=jax.ShapeDtypeStruct((M, D), jnp.float32),
    )(x, g.reshape(1, D), b.reshape(1, D))


# ----------------------------------------------------------------------------
# Pallas kernel 3: softmax attention, all heads of a half-batch per grid step
# ----------------------------------------------------------------------------
def _attn_kernel(q_ref, k_ref, v_ref, o_ref):
    q = q_ref[...].astype(jnp.bfloat16)
    k = k_ref[...].astype(jnp.bfloat16)
    s = jnp.einsum('bqd,bkd->bqk', q, k, preferred_element_type=jnp.float32)
    s = s - jnp.max(s, axis=-1, keepdims=True)
    p = jnp.exp(s)
    p = p * pl.reciprocal(jnp.sum(p, axis=-1, keepdims=True), approx=True)
    o_ref[...] = jnp.einsum('bqk,bkd->bqd', p.astype(jnp.bfloat16),
                            v_ref[...].astype(jnp.bfloat16),
                            preferred_element_type=jnp.float32)


@jax.jit
def pallas_attention(q, k, v):
    """q:[BH,Tq,hd] (pre-scaled), k/v:[BH,Tk,hd] -> softmax(q k^T) v."""
    BH, Tq, hd = q.shape
    Tk = k.shape[1]
    hdp = _rup(hd, 128)
    if hd != hdp:
        q = jnp.zeros((BH, Tq, hdp), jnp.float32).at[:, :, :hd].set(q)
        k = jnp.zeros((BH, Tk, hdp), jnp.float32).at[:, :, :hd].set(k)
        v = jnp.zeros((BH, Tk, hdp), jnp.float32).at[:, :, :hd].set(v)
    bh_t = BH // 2 if BH % 2 == 0 else BH   # 2 parallel tiles -> feeds both v7x TCs
    out = pl.pallas_call(
        _attn_kernel,
        out_shape=jax.ShapeDtypeStruct((BH, Tq, hdp), jnp.float32),
        grid_spec=pltpu.PrefetchScalarGridSpec(
            num_scalar_prefetch=0,
            grid=(BH // bh_t,),
            in_specs=[
                pl.BlockSpec((bh_t, Tq, hdp), lambda i: (i, 0, 0)),
                pl.BlockSpec((bh_t, Tk, hdp), lambda i: (i, 0, 0)),
                pl.BlockSpec((bh_t, Tk, hdp), lambda i: (i, 0, 0)),
            ],
            out_specs=pl.BlockSpec((bh_t, Tq, hdp), lambda i: (i, 0, 0)),
        ),
        compiler_params=pltpu.CompilerParams(
            dimension_semantics=("parallel",)),
    )(q, k, v)
    return out[:, :, :hd]


# ----------------------------------------------------------------------------
# Pallas kernel 4: fused bi-LSTM sequence kernel.
#   One grid step per direction (parallel).  The 4 gates are one fused matmul
#   [Np,Hp]@[Hp,4Hp]; whh stays resident in VMEM; time loop unrolled in-kernel.
#   Gate order i, f, g, o (PyTorch convention); gates padded H->Hp with zero
#   weights/bias so padded lanes stay exactly 0 in h.
# ----------------------------------------------------------------------------
def _lstm_seq_kernel(xg_ref, whh_ref, ho_ref):
    S, Np, _ = xg_ref.shape
    Hp = ho_ref.shape[-1]
    h = jnp.zeros((Np, Hp), jnp.float32)
    c = jnp.zeros((Np, Hp), jnp.float32)
    for t in range(S):
        z = xg_ref[t] + jnp.dot(h.astype(jnp.bfloat16), whh_ref[...],
                                preferred_element_type=jnp.float32)
        i = 1.0 / (1.0 + jnp.exp(-z[:, 0 * Hp:1 * Hp]))
        f = 1.0 / (1.0 + jnp.exp(-z[:, 1 * Hp:2 * Hp]))
        g = jnp.tanh(z[:, 2 * Hp:3 * Hp])
        o = 1.0 / (1.0 + jnp.exp(-z[:, 3 * Hp:4 * Hp]))
        c = f * c + i * g
        h = o * jnp.tanh(c)
        ho_ref[t] = h


@jax.jit
def _lstm_seq_call(xg, whh):
    # xg: [2, S, Np, 4*Hp] f32 (direction 1 already time-reversed);  whh: [2, Hp, 4*Hp] bf16
    _, S, Np, G = xg.shape
    Hp = whh.shape[1]
    return pl.pallas_call(
        _lstm_seq_kernel,
        out_shape=jax.ShapeDtypeStruct((2, S, Np, Hp), jnp.float32),
        grid_spec=pltpu.PrefetchScalarGridSpec(
            num_scalar_prefetch=0,
            grid=(2,),
            in_specs=[
                pl.BlockSpec((None, S, Np, G), lambda d: (d, 0, 0, 0)),
                pl.BlockSpec((None, Hp, G), lambda d: (d, 0, 0)),
            ],
            out_specs=pl.BlockSpec((None, S, Np, Hp), lambda d: (d, 0, 0, 0)),
        ),
        compiler_params=pltpu.CompilerParams(
            dimension_semantics=("parallel",)),
    )(xg, whh)


def _bilstm_layer(x, lp):
    """x: [S, N, F] -> [S, N, 2*H] for one bidirectional layer."""
    S, N, F = x.shape
    H, Hp = lp['H'], lp['Hp']
    Np = _rup(max(N, 8), 8)
    # Input projection for BOTH directions and all 4 gates in ONE fused linear.
    xg = pallas_linear(x.reshape(S * N, F), lp['wih'])          # [S*N, 8*Hp]
    xg = xg.reshape(S, N, 2, 4 * Hp)
    xg2 = jnp.stack([xg[:, :, 0, :], xg[:, :, 1, :][::-1]], axis=0)   # [2,S,N,4Hp]
    if N != Np:
        xg2 = jnp.zeros((2, S, Np, 4 * Hp), jnp.float32).at[:, :, :N, :].set(xg2)
    ho = _lstm_seq_call(xg2, lp['whh'])                          # [2,S,Np,Hp]
    fwd = ho[0, :, :N, :H]
    bwd = ho[1, ::-1, :N, :H]
    return jnp.concatenate([fwd, bwd], axis=-1)                  # [S,N,2H]


def bilstm(x, layer_params):
    """Bidirectional multi-layer LSTM, x: [S, N, F] -> [S, N, 2*H]."""
    out = x
    for lp in layer_params:
        out = _bilstm_layer(out, lp)
        # TODO(synk): inter-layer LSTM dropout is a training-mode op; identity at inference.
    return out


# ----------------------------------------------------------------------------
# MulT transformer encoder (fairseq-style, pre-norm) built on the kernels above
# ----------------------------------------------------------------------------
def sinusoidal_positions(T, E):
    # fairseq SinusoidalPositionalEmbedding, padding_idx=0, positions 1..T.
    # TODO(synk): assumes no exact-zero "padding" values in channel 0 (make_positions).
    half = E // 2
    freq = jnp.exp(jnp.arange(half, dtype=jnp.float32) * -(math.log(10000.0) / (half - 1)))
    pos = jnp.arange(1, T + 1, dtype=jnp.float32)[:, None]
    ang = pos * freq[None, :]
    emb = jnp.concatenate([jnp.sin(ang), jnp.cos(ang)], axis=1)  # [T, E]
    return emb[:, None, :]                                       # [T, 1, E]


def layernorm3(x, g, b):
    T, B, E = x.shape
    return pallas_layernorm(x.reshape(T * B, E), g, b).reshape(T, B, E)


def multihead_attention(p, query, key_):
    Tq, B, E = query.shape
    H = NUM_HEADS
    hd = E // H
    scaling = hd ** -0.5
    if 'qkv' in p:                                   # self-attention: fused QKV
        qkv = pallas_linear(query.reshape(Tq * B, E), p['qkv'])
        q = qkv[:, :E] * scaling
        k = qkv[:, E:2 * E]
        v = qkv[:, 2 * E:3 * E]
        Tk = Tq
    else:                                            # cross-attention: Q + fused KV
        Tk = key_.shape[0]
        q = pallas_linear(query.reshape(Tq * B, E), p['q']) * scaling
        kv = pallas_linear(key_.reshape(Tk * B, E), p['kv'])
        k = kv[:, :E]
        v = kv[:, E:2 * E]
    qh = q.reshape(Tq, B * H, hd).transpose(1, 0, 2)
    kh = k.reshape(Tk, B * H, hd).transpose(1, 0, 2)
    vh = v.reshape(Tk, B * H, hd).transpose(1, 0, 2)
    oh = pallas_attention(qh, kh, vh)
    attn = oh.transpose(1, 0, 2).reshape(Tq * B, E)
    return pallas_linear(attn, p['out']).reshape(Tq, B, E)


def encoder_layer(p, x, x_k=None):
    # TODO(synk): attn_mask=False chosen (no causal future mask); dropouts are eval no-ops.
    T, B, E = x.shape
    residual = x
    xn = layernorm3(x, p['ln0_g'], p['ln0_b'])
    if x_k is None:
        attn = multihead_attention(p, xn, None)
    else:
        # Reference layernorms key and value separately with the same params; the key
        # and value inputs are the same tensor in this model, so compute once.
        kn = layernorm3(x_k, p['ln0_g'], p['ln0_b'])
        attn = multihead_attention(p, xn, kn)
    x = residual + attn

    residual = x
    xn = layernorm3(x, p['ln1_g'], p['ln1_b'])
    h = pallas_linear(xn.reshape(T * B, E), p['fc1'], relu=True)   # fused fc1 + ReLU
    h = pallas_linear(h, p['fc2']).reshape(T, B, E)
    return residual + h


def transformer_encoder(p, x_in, x_in_k=None):
    T, B, E = x_in.shape
    scale = math.sqrt(E)
    x = scale * x_in + sinusoidal_positions(T, E)
    x_k = None
    if x_in_k is not None:
        x_k = scale * x_in_k + sinusoidal_positions(x_in_k.shape[0], E)
    for lp in p['layers']:
        x = encoder_layer(lp, x, x_k)
    return layernorm3(x, p['ln_g'], p['ln_b'])


# ----------------------------------------------------------------------------
# MULTModel forward
# ----------------------------------------------------------------------------
def mult_forward(params, x_l, x_a, x_v):
    # x_*: [B, T, 300];  D_text == d_l -> Conv1d projections are identity (skipped).
    B, T, _ = x_l.shape
    proj_x_l = jnp.transpose(x_l, (1, 0, 2))
    proj_x_a = jnp.transpose(x_a, (1, 0, 2))
    proj_x_v = jnp.transpose(x_v, (1, 0, 2))

    h_a_with_ls = transformer_encoder(params['trans_a_with_l'], proj_x_a, proj_x_l)
    h_a_with_vs = transformer_encoder(params['trans_a_with_v'], proj_x_a, proj_x_v)
    h_as = jnp.concatenate([h_a_with_ls, h_a_with_vs], axis=2)
    last_h_a = transformer_encoder(params['trans_a_mem'], h_as)

    h_v_with_ls = transformer_encoder(params['trans_v_with_l'], proj_x_v, proj_x_l)
    h_v_with_as = transformer_encoder(params['trans_v_with_a'], proj_x_v, proj_x_a)
    h_vs = jnp.concatenate([h_v_with_ls, h_v_with_as], axis=2)
    last_h_v = transformer_encoder(params['trans_v_mem'], h_vs)

    # partial_mode == 3
    xl_ext = pallas_linear(x_l.reshape(B * T, 300), params['l_extend']).reshape(B, T, 600)
    last_hs = jnp.concatenate(
        [jnp.transpose(xl_ext, (1, 0, 2)), last_h_a, last_h_v], axis=2)  # [T, B, 1800]

    T_, B_, E = last_hs.shape
    # NOTE: mirrors the reference exactly: proj1(relu(proj1(last_hs))), no residual.
    h = pallas_linear(last_hs.reshape(T_ * B_, E), params['proj1'], relu=True)
    h = pallas_linear(h, params['proj1']).reshape(T_, B_, E)
    last_hs_proj = transformer_encoder(params['trans_last'], h)
    output = pallas_linear(last_hs_proj.reshape(T_ * B_, E),
                           params['out_layer']).reshape(T_, B_, -1)
    return last_hs_proj, output


# ----------------------------------------------------------------------------
# DialogueGCNModel forward
# ----------------------------------------------------------------------------
def dialogue_gcn_forward(params, U, qmask, umask, seq_lengths, U_a, U_v, lengths_dag):
    del umask, seq_lengths, lengths_dag  # unused by the reference forward path used here
    B, T, Dm = U.shape
    qmask = np.asarray(qmask)       # [T, B, P], host-static speaker one-hot
    n_speakers = qmask.shape[-1]    # 2 for IEMOCAP

    # 'a' / 'v' modalities (av_using_lstm=False)
    emotions_a = pallas_linear(U_a.reshape(B * T, U_a.shape[-1]),
                               params['linear_a']).reshape(B, T, 300)
    emotions_v = pallas_linear(U_v.reshape(B * T, U_v.shape[-1]),
                               params['linear_v']).reshape(B, T, 300)

    # 'l' modality: party-wise bi-LSTM + global bi-LSTM (base_model == 'LSTM')
    qmask_bt = np.transpose(qmask, (1, 0, 2))  # [B, T, P]
    party_idx = [[np.nonzero(qmask_bt[b][:, p])[0] for b in range(B)]
                 for p in range(n_speakers)]

    # Both parties are batched into one rnn_parties run (identical to running the
    # same LSTM per party, since LSTM batch entries are independent).
    U_parties = jnp.zeros((n_speakers, B, T, Dm), jnp.float32)
    for p in range(n_speakers):
        for b in range(B):
            idx = party_idx[p][b]
            if idx.size > 0:
                U_parties = U_parties.at[p, b, :idx.size].set(U[b, idx])
    up_in = U_parties.reshape(n_speakers * B, T, Dm).transpose(1, 0, 2)  # [T, P*B, Dm]
    E_parties = bilstm(up_in, params['rnn_parties'])                     # [T, P*B, 300]
    E_parties = E_parties.transpose(1, 0, 2).reshape(n_speakers, B, T, 300)

    U_p_ = jnp.zeros((B, T, 300), jnp.float32)
    for p in range(n_speakers):
        for b in range(B):
            idx = party_idx[p][b]
            if idx.size > 0:
                U_p_ = U_p_.at[b, idx].set(E_parties[p, b, :idx.size])
    U_p = jnp.transpose(U_p_, (1, 0, 2))       # [T, B, 300]

    # self.rnn(U) is applied to batch-first U exactly as the reference does
    U_s = bilstm(U, params['rnn'])             # [B, T, 300]
    U_s = jnp.transpose(U_s, (1, 0, 2))        # [T, B, 300]
    emotions_l = jnp.transpose(U_s + U_p, (1, 0, 2))  # [B, T, 300]

    _, output = mult_forward(params, emotions_l, emotions_a, emotions_v)
    return output                              # [T, B, 6]


# ----------------------------------------------------------------------------
# Deterministic parameter initialization (shapes follow the module __init__),
# weights prepped (padded, transposed, bf16) once here.
# ----------------------------------------------------------------------------
class _Init:
    def __init__(self, seed):
        self._key = jax.random.PRNGKey(seed)

    def w(self, *shape):
        self._key, sub = jax.random.split(self._key)
        return jax.random.normal(sub, shape, jnp.float32) * 0.02


def _init_encoder(init, E, cross, layers=4):
    enc = {'layers': []}
    for _ in range(layers):
        wq = np.asarray(init.w(E, E))
        wk = np.asarray(init.w(E, E))
        wv = np.asarray(init.w(E, E))
        wo = np.asarray(init.w(E, E))
        zb = np.zeros((E,), np.float32)
        lp = {
            'ln0_g': jnp.ones((E,), jnp.float32), 'ln0_b': jnp.zeros((E,), jnp.float32),
            'ln1_g': jnp.ones((E,), jnp.float32), 'ln1_b': jnp.zeros((E,), jnp.float32),
            'out': _prep_linear(wo, zb),
            'fc1': _prep_linear(np.asarray(init.w(4 * E, E)), np.zeros((4 * E,), np.float32)),
            'fc2': _prep_linear(np.asarray(init.w(E, 4 * E)), zb),
        }
        if cross:
            lp['q'] = _prep_linear(wq, zb)
            lp['kv'] = _prep_linear(np.concatenate([wk, wv], axis=0),
                                    np.zeros((2 * E,), np.float32))
        else:
            lp['qkv'] = _prep_linear(np.concatenate([wq, wk, wv], axis=0),
                                     np.zeros((3 * E,), np.float32))
        enc['layers'].append(lp)
    enc['ln_g'] = jnp.ones((E,), jnp.float32)
    enc['ln_b'] = jnp.zeros((E,), jnp.float32)
    return enc


def _init_bilstm(init, input_size, hidden, num_layers=2):
    H = hidden
    Hp = _rup(H, 128)
    layers = []
    for l in range(num_layers):
        F = input_size if l == 0 else 2 * hidden
        Kp, TK = _pad_and_tile(F)
        Np_, TN = _pad_and_tile(8 * Hp)
        wih_pad = np.zeros((Kp, Np_), np.float32)
        bih_pad = np.zeros((1, Np_), np.float32)
        whh_pad = np.zeros((2, Hp, 4 * Hp), np.float32)
        for d in range(2):
            wih = np.asarray(init.w(4 * H, F))     # torch layout [4H, F]
            whh = np.asarray(init.w(4 * H, H))     # torch layout [4H, H]
            bih = np.zeros((4 * H,), np.float32)
            bhh = np.zeros((4 * H,), np.float32)
            for g in range(4):                     # gate order i, f, g, o
                col = (d * 4 + g) * Hp
                wih_pad[:F, col:col + H] = wih[g * H:(g + 1) * H, :].T
                bih_pad[0, col:col + H] = bih[g * H:(g + 1) * H] + bhh[g * H:(g + 1) * H]
                whh_pad[d, :H, g * Hp:g * Hp + H] = whh[g * H:(g + 1) * H, :].T
        wih_lin = {'w': jnp.asarray(wih_pad, jnp.bfloat16),
                   'b': jnp.asarray(bih_pad, jnp.float32),
                   'N': 8 * Hp, 'K': F, 'Np': Np_, 'Kp': Kp, 'TN': TN, 'TK': TK}
        layers.append({'wih': wih_lin,
                       'whh': jnp.asarray(whh_pad, jnp.bfloat16),
                       'H': H, 'Hp': Hp})
    return layers


def init_params(seed=42):
    # Only parameters actually used by the forward pass are materialized.
    # (trans_l_with_a/v, trans_l_mem, lstm_last, proj2, lstm_l, rnn_a/v, linear_l
    #  are constructed in __init__ but never used in this forward path.)
    init = _Init(seed)
    z = lambda n: np.zeros((n,), np.float32)
    return {
        'linear_a': _prep_linear(np.asarray(init.w(300, 100)), z(300)),
        'linear_v': _prep_linear(np.asarray(init.w(300, 512)), z(300)),
        'rnn': _init_bilstm(init, 1024, 150),
        'rnn_parties': _init_bilstm(init, 1024, 150),
        'l_extend': _prep_linear(np.asarray(init.w(600, 300)), z(600)),
        'trans_a_with_l': _init_encoder(init, 300, cross=True),
        'trans_a_with_v': _init_encoder(init, 300, cross=True),
        'trans_v_with_l': _init_encoder(init, 300, cross=True),
        'trans_v_with_a': _init_encoder(init, 300, cross=True),
        'trans_a_mem': _init_encoder(init, 600, cross=False),
        'trans_v_mem': _init_encoder(init, 600, cross=False),
        'trans_last': _init_encoder(init, 1800, cross=False),
        'proj1': _prep_linear(np.asarray(init.w(1800, 1800)), z(1800)),
        'out_layer': _prep_linear(np.asarray(init.w(6, 1800)), z(6)),
    }


# ----------------------------------------------------------------------------
if __name__ == "__main__":
    B, T = 2, 8
    key = jax.random.PRNGKey(0)
    ku, ka, kv = jax.random.split(key, 3)
    U = jax.random.normal(ku, (B, T, 1024), jnp.float32)
    U_a = jax.random.normal(ka, (B, T, 100), jnp.float32)
    U_v = jax.random.normal(kv, (B, T, 512), jnp.float32)

    speakers = (np.arange(T)[:, None] + np.arange(B)[None, :]) % 2   # [T, B]
    qmask = np.eye(2, dtype=np.float32)[speakers]                    # [T, B, 2]
    umask = jnp.ones((B, T), jnp.float32)
    seq_lengths = [T] * B
    lengths_dag = [T] * B

    params = init_params(seed=42)
    out = dialogue_gcn_forward(params, U, qmask, umask, seq_lengths, U_a, U_v, lengths_dag)
    out = jax.block_until_ready(out)

    assert out.shape == (T, B, 6), out.shape
    assert bool(jnp.all(jnp.isfinite(out)))
    print("KERNEL_OK")
</pallas_src>

<mosaic_0001>
module attributes {stable_mosaic.version = 11 : i64} {
  func.func @_linear_kernel(%arg0: i32, %arg1: i32, %arg2: memref<16x128xbf16, #tpu.memory_space<vmem>>, %arg3: memref<128x384xbf16, #tpu.memory_space<vmem>>, %arg4: memref<1x384xf32, #tpu.memory_space<vmem>>, %arg5: memref<16x384xf32, #tpu.memory_space<vmem>>) attributes {dimension_semantics = [#tpu.dimension_semantics<parallel>, #tpu.dimension_semantics<arbitrary>], iteration_bounds = array<i64: 1, 1>, scalar_prefetch = 0 : i64, scratch_operands = 0 : i64, tpu.core_type = #tpu.core_type<tc>, window_params = [{transform_indices = @transform_0, window_bounds = array<i64: 16, 128>}, {transform_indices = @transform_1, window_bounds = array<i64: 128, 384>}, {transform_indices = @transform_2, window_bounds = array<i64: 1, 384>}, {transform_indices = @transform_3, window_bounds = array<i64: 16, 384>}]} {
    %c0_i32 = arith.constant 0 : i32
    %0 = arith.cmpi eq, %arg1, %c0_i32 : i32
    %1 = arith.extui %0 : i1 to i32
    %c0_i32_0 = arith.constant 0 : i32
    %2 = arith.cmpi ne, %1, %c0_i32_0 : i32
    scf.if %2 {
      %c0_8 = arith.constant 0 : index
      %c0_9 = arith.constant 0 : index
      %9 = vector.load %arg4[%c0_8, %c0_9] : memref<1x384xf32, #tpu.memory_space<vmem>>, vector<1x384xf32>
      %10 = vector.shape_cast %9 : vector<1x384xf32> to vector<1x384xf32>
      %11 = vector.broadcast %10 : vector<1x384xf32> to vector<16x384xf32>
      %c0_10 = arith.constant 0 : index
      %c0_11 = arith.constant 0 : index
      %12 = vector.load %arg5[%c0_10, %c0_11] : memref<16x384xf32, #tpu.memory_space<vmem>>, vector<16x384xf32>
      tpu.vector_store %arg5[%c0_10, %c0_11], %11 {strides = array<i32>} : memref<16x384xf32, #tpu.memory_space<vmem>>, vector<16x384xf32>,
    } else {
    }
    %c0 = arith.constant 0 : index
    %c0_1 = arith.constant 0 : index
    %3 = vector.load %arg5[%c0, %c0_1] : memref<16x384xf32, #tpu.memory_space<vmem>>, vector<16x384xf32>
    %c0_2 = arith.constant 0 : index
    %c0_3 = arith.constant 0 : index
    %4 = vector.load %arg2[%c0_2, %c0_3] : memref<16x128xbf16, #tpu.memory_space<vmem>>, vector<16x128xbf16>
    %c0_4 = arith.constant 0 : index
    %c0_5 = arith.constant 0 : index
    %5 = vector.load %arg3[%c0_4, %c0_5] : memref<128x384xbf16, #tpu.memory_space<vmem>>, vector<128x384xbf16>
    %cst = arith.constant dense<0.000000e+00> : vector<16x384xf32>
    %6 = tpu.matmul %4, %5, %cst {dimension_numbers = #tpu.dot_dimension_numbers<[1], [0], [0], [1], [0, 0, 1, 1], [], []>} : vector<16x128xbf16>, vector<128x384xbf16>, vector<16x384xf32> -> vector<16x384xf32>
    %7 = arith.addf %3, %6 : vector<16x384xf32>
    %c0_6 = arith.constant 0 : index
    %c0_7 = arith.constant 0 : index
    %8 = vector.load %arg5[%c0_6, %c0_7] : memref<16x384xf32, #tpu.memory_space<vmem>>, vector<16x384xf32>
    tpu.vector_store %arg5[%c0_6, %c0_7], %7 {strides = array<i32>} : memref<16x384xf32, #tpu.memory_space<vmem>>, vector<16x384xf32>,
    return
  }
  func.func @transform_0(%arg0: i32, %arg1: i32) -> (i32, i32) {
    %c0_i32 = arith.constant 0 : i32
    %c0_i32_0 = arith.constant 0 : i32
    return %c0_i32, %arg1 : i32, i32
  }
  func.func @transform_1(%arg0: i32, %arg1: i32) -> (i32, i32) {
    %c0_i32 = arith.constant 0 : i32
    return %arg1, %arg0 : i32, i32
  }
  func.func @transform_2(%arg0: i32, %arg1: i32) -> (i32, i32) {
    %c0_i32 = arith.constant 0 : i32
    %c0_i32_0 = arith.constant 0 : i32
    return %c0_i32, %arg0 : i32, i32
  }
  func.func @transform_3(%arg0: i32, %arg1: i32) -> (i32, i32) {
    %c0_i32 = arith.constant 0 : i32
    %c0_i32_0 = arith.constant 0 : i32
    return %c0_i32, %arg0 : i32, i32
  }
}

</mosaic_0001>

<llo_original>
// kernel: _linear_impl.1
$region0: #{_linear_impl.1}
  #allocation0 [shape = 'u32[]', space=smem, size = 0x4, offset = 0x4, fixed_abs, tag = 'smem constant byte address 0x4 - core index']
  #allocation1 [shape = 'u32[144,128]{1,0:T(1,128)}', space=vmem, size = 0x12000, scoped, tag = 'internal scratch']
  %s0 = inlined_call_operand.vmem [shape: bf16[16,128], index: 0, kind: input, shape index: {}]
  %s1 = inlined_call_operand.hbm [shape: bf16[128,384], index: 1, kind: input, shape index: {}]
  %s2 = inlined_call_operand.vmem [shape: f32[1,384], index: 2, kind: input, shape index: {}]
  %s3 = inlined_call_operand.hbm [shape: f32[16,384], index: 3, kind: output, shape index: {}]
  %s4 = sld [smem:[#allocation0]]
  $region30: #{_linear_impl.1} parent=0
    _
  %s6 = ssub.s32 1, %s4
  %s7 = scalar_select 0, %s6, %s4
  $region1: #{_linear_impl.1} parent=0
    #allocation2 [shape = 'u8[98304]{0}', space=vmem, size = 0x18000, scoped, tag = 'input window, operand 1, single buffered']
    #allocation3 [shape = 's32[1]{0}', space=sflag, size = 0x4, scoped, tag = 'scoped memory for _linear_impl.1']
    #allocation4 [shape = 's32[1]{0}', space=sflag, size = 0x4, scoped, tag = 'scoped memory for _linear_impl.1']
    #allocation5 [shape = 'u8[24576]{0}', space=vmem, size = 0x6000, scoped, tag = 'output window, operand 0, single buffered']
    %8 = vsyncpa [#allocation3], 0
    %9 = vsyncpa [#allocation4], 0
    // Predicated region
    $region2: #{_linear_impl.1} parent=1 // pred_check
      _
    $region3: #{_linear_impl.1} parent=1 // pred_check_branch
      %11 = sbr.rel (0) target = $region5
    $region4: #{_linear_impl.1} parent=1 // pred_region
      _
    $region5: #{_linear_impl.1} parent=1 // pred_fallthru
      _
    // Predicated region
    $region6: #{_linear_impl.1} parent=1 // pred_check
      _
    $region7: #{_linear_impl.1} parent=1 // pred_check_branch
      %13 = sbr.rel (0) target = $region9
    $region8: #{_linear_impl.1} parent=1 // pred_region
      %s15 = ssub.s32 3072, 3072
      %16 = vsyncadd [#allocation3], %s15
      %s17 = sshll.u32 [#allocation2], 4
      %s18 = int_to_ptr.vmem [resolvable:$true] %s17
      %23 = dma.hbm_to_vmem [thread:$0]  %s1, 3072, %s18, [#allocation3], 192, 192, 12
    $region9: #{_linear_impl.1} parent=1 // pred_fallthru
      _
    // Predicated region
    $region10: #{_linear_impl.1} parent=1 // pred_check
      _
    $region11: #{_linear_impl.1} parent=1 // pred_check_branch
      %25 = sbr.rel (0) target = $region13
    $region12: #{_linear_impl.1} parent=1 // pred_region
      _
    $region13: #{_linear_impl.1} parent=1 // pred_fallthru
      _
    // Predicated region
    $region14: #{_linear_impl.1} parent=1 // pred_check
      _
    $region15: #{_linear_impl.1} parent=1 // pred_check_branch
      %27 = sbr.rel (0) target = $region17
    $region16: #{_linear_impl.1} parent=1 // pred_region
      %28 = dma.done [#allocation3], 3072
    $region17: #{_linear_impl.1} parent=1 // pred_fallthru
      _
    %p30 = scmp.eq.s32.totalorder 0, 0
    // Predicated region
    $region18: #{_linear_impl.1} parent=1 // pred_check
      %p31 = pneg %p30
    $region19: #{_linear_impl.1} parent=1 // pred_check_branch
      %33 = sbr.rel (%p31) target = $region21
    $region20: #{_linear_impl.1} parent=1 // pred_region
      %v34 = vld [vmem:[%s2] sm:$0x7]
      %v36 = vlaneseq
      %v37 = vshrl.u32 %v36, 7
      %v38 = vsub.s32 0, %v37
      %v39 = vrot.slane %v34, %v38
      %v40 = vlaneseq
      %v41 = vshrl.u32 %v40, 7
      %v42 = vsub.s32 1, %v41
      %v43 = vrot.slane %v34, %v42
      %v44 = vlaneseq
      %v45 = vshrl.u32 %v44, 7
      %v46 = vsub.s32 2, %v45
      %v47 = vrot.slane %v34, %v46
      %51 = vst [vmem:[#allocation5] sm:$0xff] %v39
      %52 = vst [vmem:[#allocation5 + $0x8] sm:$0xff] %v43
      %53 = vst [vmem:[#allocation5 + $0x10] sm:$0xff] %v47
      %54 = vst [vmem:[#allocation5 + $0x18] sm:$0xff] %v39
      %55 = vst [vmem:[#allocation5 + $0x20] sm:$0xff] %v43
      %56 = vst [vmem:[#allocation5 + $0x28] sm:$0xff] %v47
    $region21: #{_linear_impl.1} parent=1 // pred_fallthru
      _
    %v57 = vld [vmem:[#allocation5] sm:$0xff]
    %v58 = vld [vmem:[#allocation5 + $0x8] sm:$0xff]
    %v59 = vld [vmem:[#allocation5 + $0x10] sm:$0xff]
    %v60 = vld [vmem:[#allocation5 + $0x18] sm:$0xff]
    %v61 = vld [vmem:[#allocation5 + $0x20] sm:$0xff]
    %v62 = vld [vmem:[#allocation5 + $0x28] sm:$0xff]
    %v63 = vld [vmem:[%s0] sm:$0xf]
    %v64 = vld [vmem:[%s0 + $0x4] sm:$0xf]
    %v65 = vld [vmem:[#allocation2] sm:$0xff]
    %v66 = vld [vmem:[#allocation2 + $0x8] sm:$0xf]
    %v67 = vld [vmem:[#allocation2 + $0xc] sm:$0xff]
    %v68 = vld [vmem:[#allocation2 + $0x14] sm:$0xf]
    %v69 = vld [vmem:[#allocation2 + $0x18] sm:$0xff]
    %v70 = vld [vmem:[#allocation2 + $0x20] sm:$0xf]
    %v71 = vld [vmem:[#allocation2 + $0x24] sm:$0xff]
    %v72 = vld [vmem:[#allocation2 + $0x2c] sm:$0xf]
    %v73 = vld [vmem:[#allocation2 + $0x30] sm:$0xff]
    %v74 = vld [vmem:[#allocation2 + $0x38] sm:$0xf]
    %v75 = vld [vmem:[#allocation2 + $0x3c] sm:$0xff]
    %v76 = vld [vmem:[#allocation2 + $0x44] sm:$0xf]
    %v77 = vld [vmem:[#allocation2 + $0x48] sm:$0xff]
    %v78 = vld [vmem:[#allocation2 + $0x50] sm:$0xf]
    %v79 = vld [vmem:[#allocation2 + $0x54] sm:$0xff]
    %v80 = vld [vmem:[#allocation2 + $0x5c] sm:$0xf]
    %v81 = vld [vmem:[#allocation2 + $0x60] sm:$0xff]
    %v82 = vld [vmem:[#allocation2 + $0x68] sm:$0xf]
    %v83 = vld [vmem:[#allocation2 + $0x6c] sm:$0xff]
    %v84 = vld [vmem:[#allocation2 + $0x74] sm:$0xf]
    %v85 = vld [vmem:[#allocation2 + $0x78] sm:$0xff]
    %v86 = vld [vmem:[#allocation2 + $0x80] sm:$0xf]
    %v87 = vld [vmem:[#allocation2 + $0x84] sm:$0xff]
    %v88 = vld [vmem:[#allocation2 + $0x8c] sm:$0xf]
    %v89 = vld [vmem:[#allocation2 + $0x90] sm:$0xff]
    %v90 = vld [vmem:[#allocation2 + $0x98] sm:$0xf]
    %v91 = vld [vmem:[#allocation2 + $0x9c] sm:$0xff]
    %v92 = vld [vmem:[#allocation2 + $0xa4] sm:$0xf]
    %v93 = vld [vmem:[#allocation2 + $0xa8] sm:$0xff]
    %v94 = vld [vmem:[#allocation2 + $0xb0] sm:$0xf]
    %v95 = vld [vmem:[#allocation2 + $0xb4] sm:$0xff]
    %v96 = vld [vmem:[#allocation2 + $0xbc] sm:$0xf]
    %v99 = vunpack.c.l.b16 %v63
    %v100 = vunpack.c.l.b16 %v64
    %v101 = vpack.c.b16 %v100, %v99
    %v135 = vunpack.c.l.b16 %v65
    %v136 = vunpack.c.h.b16 %v65
    %v137 = vunpack.c.l.b16 %v66
    %v138 = vunpack.c.l.b16 %v67
    %v139 = vunpack.c.h.b16 %v67
    %v140 = vunpack.c.l.b16 %v68
    %v141 = vunpack.c.l.b16 %v69
    %v142 = vunpack.c.h.b16 %v69
    %v143 = vunpack.c.l.b16 %v70
    %v144 = vunpack.c.l.b16 %v71
    %v145 = vunpack.c.h.b16 %v71
    %v146 = vunpack.c.l.b16 %v72
    %v147 = vunpack.c.l.b16 %v73
    %v148 = vunpack.c.h.b16 %v73
    %v149 = vunpack.c.l.b16 %v74
    %v150 = vunpack.c.l.b16 %v75
    %v151 = vunpack.c.h.b16 %v75
    %v152 = vunpack.c.l.b16 %v76
    %v153 = vunpack.c.l.b16 %v77
    %v154 = vunpack.c.h.b16 %v77
    %v155 = vunpack.c.l.b16 %v78
    %v156 = vunpack.c.l.b16 %v79
    %v157 = vunpack.c.h.b16 %v79
    %v158 = vunpack.c.l.b16 %v80
    %v159 = vunpack.c.l.b16 %v81
    %v160 = vunpack.c.h.b16 %v81
    %v161 = vunpack.c.l.b16 %v82
    %v162 = vunpack.c.l.b16 %v83
    %v163 = vunpack.c.h.b16 %v83
    %v164 = vunpack.c.l.b16 %v84
    %v165 = vunpack.c.l.b16 %v85
    %v166 = vunpack.c.h.b16 %v85
    %v167 = vunpack.c.l.b16 %v86
    %v168 = vunpack.c.l.b16 %v87
    %v169 = vunpack.c.h.b16 %v87
    %v170 = vunpack.c.l.b16 %v88
    %v171 = vunpack.c.l.b16 %v89
    %v172 = vunpack.c.h.b16 %v89
    %v173 = vunpack.c.l.b16 %v90
    %v174 = vunpack.c.l.b16 %v91
    %v175 = vunpack.c.h.b16 %v91
    %v176 = vunpack.c.l.b16 %v92
    %v177 = vunpack.c.l.b16 %v93
    %v178 = vunpack.c.h.b16 %v93
    %v179 = vunpack.c.l.b16 %v94
    %v180 = vunpack.c.l.b16 %v95
    %v181 = vunpack.c.h.b16 %v95
    %v182 = vunpack.c.l.b16 %v96
    %v183 = vpack.c.b16 %v138, %v135
    %v184 = vpack.c.b16 %v139, %v136
    %v185 = vpack.c.b16 %v140, %v137
    %v186 = vpack.c.b16 %v144, %v141
    %v187 = vpack.c.b16 %v145, %v142
    %v188 = vpack.c.b16 %v146, %v143
    %v189 = vpack.c.b16 %v150, %v147
    %v190 = vpack.c.b16 %v151, %v148
    %v191 = vpack.c.b16 %v152, %v149
    %v192 = vpack.c.b16 %v156, %v153
    %v193 = vpack.c.b16 %v157, %v154
    %v194 = vpack.c.b16 %v158, %v155
    %v195 = vpack.c.b16 %v162, %v159
    %v196 = vpack.c.b16 %v163, %v160
    %v197 = vpack.c.b16 %v164, %v161
    %v198 = vpack.c.b16 %v168, %v165
    %v199 = vpack.c.b16 %v169, %v166
    %v200 = vpack.c.b16 %v170, %v167
    %v201 = vpack.c.b16 %v174, %v171
    %v202 = vpack.c.b16 %v175, %v172
    %v203 = vpack.c.b16 %v176, %v173
    %v204 = vpack.c.b16 %v180, %v177
    %v205 = vpack.c.b16 %v181, %v178
    %v206 = vpack.c.b16 %v182, %v179
    %231 = vmatprep.subr.bf16.mxu0 %v184
    %232 = vmatpush1.bf16.msra.mxu0 %v183
    %233 = vmatprep.subr.bf16.mxu0 %v187
    %234 = vmatpush1.bf16.msra.mxu0 %v186
    %235 = vmatprep.subr.bf16.mxu0 %v190
    %236 = vmatpush1.bf16.msra.mxu0 %v189
    %237 = vmatprep.subr.bf16.mxu0 %v193
    %238 = vmatpush1.bf16.msra.mxu0 %v192
    %239 = vmatprep.subr.bf16.mxu0 %v196
    %240 = vmatpush1.bf16.msra.mxu0 %v195
    %241 = vmatprep.subr.bf16.mxu0 %v199
    %242 = vmatpush1.bf16.msra.mxu0 %v198
    %243 = vmatprep.subr.bf16.mxu0 %v202
    %244 = vmatpush1.bf16.msra.mxu0 %v201
    %245 = vmatprep.subr.bf16.mxu0 %v205
    %246 = vmatpush1.bf16.msra.mxu0 %v204
    %247 = vmatprep.subr.bf16.mxu0 0
    %248 = vmatpush1.bf16.msra.mxu0 0
    %249 = vmatprep.subr.bf16.mxu0 0
    %250 = vmatpush1.bf16.msra.mxu0 0
    %251 = vmatprep.subr.bf16.mxu0 0
    %252 = vmatpush1.bf16.msra.mxu0 0
    %253 = vmatprep.subr.bf16.mxu0 0
    %254 = vmatpush1.bf16.msra.mxu0 0
    %255 = vmatprep.subr.bf16.mxu0 0
    %256 = vmatpush1.bf16.msra.mxu0 0
    %257 = vmatprep.subr.bf16.mxu0 0
    %258 = vmatpush1.bf16.msra.mxu0 0
    %259 = vmatprep.subr.bf16.mxu0 0
    %260 = vmatpush1.bf16.msra.mxu0 0
    %261 = vmatprep.subr.bf16.mxu0 0
    %262 = vmatpush1.bf16.msra.mxu0 0
    %263 = vmatprep.mubr.bf16.mxu0 0
    %264 = vmatmul.mubr.bf16.gmra.mrb[0].mxu0 %v101
    %v265 = vpop.f32.mrb[0].mxu0
    %v266 = vadd.f32 0.0, %v265
    %v267 = vpop.f32.mrb[0].mxu0
    %v268 = vadd.f32 0.0, %v267
    %v269 = vpop.f32.mrb[0].mxu0
    %v270 = vadd.f32 0.0, %v269
    %v271 = vpop.f32.mrb[0].mxu0
    %v272 = vadd.f32 0.0, %v271
    %273 = vdwg.mxu0
    %274 = vmatprep.subr.bf16.mxu0 0
    %275 = vmatpush1.bf16.msra.mxu0 %v185
    %276 = vmatprep.subr.bf16.mxu0 0
    %277 = vmatpush1.bf16.msra.mxu0 %v188
    %278 = vmatprep.subr.bf16.mxu0 0
    %279 = vmatpush1.bf16.msra.mxu0 %v191
    %280 = vmatprep.subr.bf16.mxu0 0
    %281 = vmatpush1.bf16.msra.mxu0 %v194
    %282 = vmatprep.subr.bf16.mxu0 0
    %283 = vmatpush1.bf16.msra.mxu0 %v197
    %284 = vmatprep.subr.bf16.mxu0 0
    %285 = vmatpush1.bf16.msra.mxu0 %v200
    %286 = vmatprep.subr.bf16.mxu0 0
    %287 = vmatpush1.bf16.msra.mxu0 %v203
    %288 = vmatprep.subr.bf16.mxu0 0
    %289 = vmatpush1.bf16.msra.mxu0 %v206
    %290 = vmatprep.subr.bf16.mxu0 0
    %291 = vmatpush1.bf16.msra.mxu0 0
    %292 = vmatprep.subr.bf16.mxu0 0
    %293 = vmatpush1.bf16.msra.mxu0 0
    %294 = vmatprep.subr.bf16.mxu0 0
    %295 = vmatpush1.bf16.msra.mxu0 0
    %296 = vmatprep.subr.bf16.mxu0 0
    %297 = vmatpush1.bf16.msra.mxu0 0
    %298 = vmatprep.subr.bf16.mxu0 0
    %299 = vmatpush1.bf16.msra.mxu0 0
    %300 = vmatprep.subr.bf16.mxu0 0
    %301 = vmatpush1.bf16.msra.mxu0 0
    %302 = vmatprep.subr.bf16.mxu0 0
    %303 = vmatpush1.bf16.msra.mxu0 0
    %304 = vmatprep.subr.bf16.mxu0 0
    %305 = vmatpush1.bf16.msra.mxu0 0
    %306 = vmatprep.mubr.bf16.mxu0 0
    %307 = vmatmul.mubr.bf16.gmra.mrb[0].mxu0 %v101
    %v308 = vpop.f32.mrb[0].mxu0
    %v309 = vadd.f32 0.0, %v308
    %v310 = vpop.f32.mrb[0].mxu0
    %v311 = vpop.f32.mrb[0].mxu0
    %v312 = vadd.f32 0.0, %v311
    %v313 = vpop.f32.mrb[0].mxu0
    %314 = vdwg.mxu0
    %v315 = vadd.f32 %v57, %v266
    %v316 = vadd.f32 %v58, %v268
    %v317 = vadd.f32 %v59, %v309
    %v318 = vadd.f32 %v60, %v270
    %v319 = vadd.f32 %v61, %v272
    %v320 = vadd.f32 %v62, %v312
    %321 = vst [vmem:[#allocation5] sm:$0xff] %v315
    %322 = vst [vmem:[#allocation5 + $0x8] sm:$0xff] %v316
    %323 = vst [vmem:[#allocation5 + $0x10] sm:$0xff] %v317
    %324 = vst [vmem:[#allocation5 + $0x18] sm:$0xff] %v318
    %325 = vst [vmem:[#allocation5 + $0x20] sm:$0xff] %v319
    %326 = vst [vmem:[#allocation5 + $0x28] sm:$0xff] %v320
    // Predicated region
    $region22: #{_linear_impl.1} parent=1 // pred_check
      _
    $region23: #{_linear_impl.1} parent=1 // pred_check_branch
      %328 = sbr.rel (0) target = $region25
    $region24: #{_linear_impl.1} parent=1 // pred_region
      %s330 = ssub.s32 768, 768
      %331 = vsyncadd [#allocation4], %s330
      %s332 = sshll.u32 [#allocation5], 4
      %s333 = int_to_ptr.vmem [resolvable:$true] %s332
      %338 = dma.vmem_to_hbm [thread:$0]  %s333, 768, %s3, [#allocation4], 384, 384, 24
    $region25: #{_linear_impl.1} parent=1 // pred_fallthru
      _
    // Predicated region
    $region26: #{_linear_impl.1} parent=1 // pred_check
      _
    $region27: #{_linear_impl.1} parent=1 // pred_check_branch
      %340 = sbr.rel (0) target = $region29
    $region28: #{_linear_impl.1} parent=1 // pred_region
      %341 = dma.done [#allocation4], 768
    $region29: #{_linear_impl.1} parent=1 // pred_fallthru
      _
    %342 = vsyncpa [#allocation3], 1
    %343 = vsyncpa [#allocation4], 1

</llo_original>
